<compile_context>
chip_gen: v6e
topology: v6e:2x2x1
jax: 0.10.0
libtpu: 0.0.40
codegen_flags: <defaults>
</compile_context>

<pallas_src>
import functools

import jax
import jax.numpy as jnp
from jax.experimental import pallas as pl
from jax.experimental.pallas import tpu as pltpu


def _round_up(x: int, m: int) -> int:
    return (x + m - 1) // m * m


def _vmem_capacity_bytes() -> int:
    try:
        return int(pltpu.get_tpu_info().vmem_capacity_bytes)
    except Exception:
        return 64 * 1024 * 1024          # conservative fallback (v7x-sized)


def _is_v5e() -> bool:
    try:
        kind = jax.devices()[0].device_kind.lower()
    except Exception:
        return False
    return ("v5e" in kind) or ("v5 lite" in kind) or ("v5lite" in kind)


def _default_compute_dtype(x_dtype, compute_dtype):
    if compute_dtype is not None:
        return jnp.dtype(compute_dtype)
    # v5e: no fast f32 MXU path + slowest HBM -> bf16 matmul inputs by default
    # (accumulation stays f32).  Other generations keep the input dtype.
    if jnp.dtype(x_dtype) == jnp.float32 and _is_v5e():
        return jnp.dtype(jnp.bfloat16)
    return jnp.dtype(x_dtype)


def _pick_block_h(h_p: int, desired: int) -> int:
    """Largest multiple of 128 that divides h_p and is <= desired."""
    units = h_p // 128
    best = 1
    for k in range(1, units + 1):
        if units % k == 0 and k * 128 <= desired:
            best = k
    return best * 128


# -----------------------------------------------------------------------------
# Kernels
# -----------------------------------------------------------------------------
def _swiglu_resident_kernel(x_ref, w12_ref, b12_ref, w3_ref, b3_ref, o_ref):
    # x_ref: (tm, D_in)   w12_ref: (2, D_in, H)   b12_ref: (2, 1, H) f32
    # w3_ref: (H, D_out)  b3_ref: (1, D_out) f32  o_ref: (tm, D_out)
    x = x_ref[...]
    x1 = jnp.dot(x, w12_ref[0], preferred_element_type=jnp.float32) + b12_ref[0]
    x2 = jnp.dot(x, w12_ref[1], preferred_element_type=jnp.float32) + b12_ref[1]
    hidden = (x1 * jax.nn.sigmoid(x1)) * x2          # silu(x1) * x2, f32 on VPU/EUP
    out = jnp.dot(hidden.astype(w3_ref.dtype), w3_ref[...],
                  preferred_element_type=jnp.float32) + b3_ref[...]
    o_ref[...] = out.astype(o_ref.dtype)


def _swiglu_htiled_kernel(x_ref, w12_ref, b12_ref, w3_ref, b3_ref, o_ref, acc_ref):
    # Grid (token_tiles, h_tiles); h axis is innermost + "arbitrary".
    j = pl.program_id(1)

    @pl.when(j == 0)
    def _():
        acc_ref[...] = jnp.zeros_like(acc_ref)

    x = x_ref[...]
    x1 = jnp.dot(x, w12_ref[0], preferred_element_type=jnp.float32) + b12_ref[0]
    x2 = jnp.dot(x, w12_ref[1], preferred_element_type=jnp.float32) + b12_ref[1]
    hidden = (x1 * jax.nn.sigmoid(x1)) * x2
    acc_ref[...] += jnp.dot(hidden.astype(w3_ref.dtype), w3_ref[...],
                            preferred_element_type=jnp.float32)

    @pl.when(j == pl.num_programs(1) - 1)
    def _():
        o_ref[...] = (acc_ref[...] + b3_ref[...]).astype(o_ref.dtype)


# -----------------------------------------------------------------------------
# Parameter preparation (hoisted out of the hot path)
# -----------------------------------------------------------------------------
def prepare_swiglu_params(w1, b1, w2, b2, w3, b3, *, compute_dtype=jnp.float32):
    """Pad to lane-dense (128-multiple) shapes, stack W1/W2, cast — ONCE.

    Call at parameter-load time; pass the result to swiglu_apply so the
    pad/stack/cast never re-runs per forward call.  Weights are nn.Linear
    weights pre-transposed to [in, out]:  w1, w2: [D_in, H], w3: [H, D_out].
    Zero-padding is exact for SwiGLU (padded hidden cols -> silu(0)*0 = 0,
    padded W3 rows contribute 0).
    """
    cd = jnp.dtype(compute_dtype)
    d_in, h = w1.shape
    d_out = w3.shape[1]
    d_in_p = _round_up(d_in, 128)
    h_p = _round_up(h, 128)
    d_out_p = _round_up(d_out, 128)

    w1p = jnp.pad(w1, ((0, d_in_p - d_in), (0, h_p - h)))
    w2p = jnp.pad(w2, ((0, d_in_p - d_in), (0, h_p - h)))
    w12 = jnp.stack([w1p, w2p]).astype(cd)                       # (2, D_in_p, H_p)
    b12 = jnp.stack([jnp.pad(b1, (0, h_p - h)),
                     jnp.pad(b2, (0, h_p - h))]).reshape(2, 1, h_p).astype(jnp.float32)
    w3p = jnp.pad(w3, ((0, h_p - h), (0, d_out_p - d_out))).astype(cd)
    b3p = jnp.pad(b3, (0, d_out_p - d_out)).reshape(1, d_out_p).astype(jnp.float32)
    return {"w12": w12, "b12": b12, "w3": w3p, "b3": b3p}


# -----------------------------------------------------------------------------
# Forward
# -----------------------------------------------------------------------------
@functools.partial(
    jax.jit, static_argnames=("out_features", "block_m", "block_h", "weight_tiling"))
def swiglu_apply(x, params, *, out_features, block_m=None, block_h=None,
                 weight_tiling=None):
    """SwiGLU forward with pre-fused params (see prepare_swiglu_params).

    weight_tiling: None (auto), "resident" (weights live in VMEM for the whole
    grid, single-buffered) or "htiled" (stream H-tiles of the weights with an
    f32 accumulator; scales to any H and fits v7x's 64 MiB VMEM).
    """
    w12, b12, w3p, b3p = params["w12"], params["b12"], params["w3"], params["b3"]
    compute_dtype = w12.dtype
    out_dtype = x.dtype
    itemsize = jnp.dtype(compute_dtype).itemsize
    out_itemsize = jnp.dtype(out_dtype).itemsize

    _, d_in_p, h_p = w12.shape
    d_out_p = w3p.shape[1]
    d_in = x.shape[-1]
    orig_shape = x.shape

    x2d = x.reshape(-1, d_in)
    n = x2d.shape[0]

    # ---- per-generation VMEM budget (leave the compiler ~16 MiB headroom). ----
    cap = _vmem_capacity_bytes()
    vmem_limit = int(max(32 << 20, min(cap - (16 << 20), 110 << 20)))
    budget = int(vmem_limit * 0.9)

    def fits_resident(bm):
        weights = ((2 * d_in_p * h_p + h_p * d_out_p) * itemsize
                   + (2 * h_p + d_out_p) * 4)                 # single-buffered
        acts = 2 * bm * d_in_p * itemsize + 2 * bm * d_out_p * out_itemsize
        inter = bm * (2 * h_p * 4 + h_p * itemsize + d_out_p * 4)  # x1,x2,hidden,out
        return weights + acts + inter <= budget

    # ---- token-tile rows (multiples of 256/128 at model scale; 16-aligned). ----
    if block_m is None:
        bm = 512 if (itemsize <= 2 and cap >= (100 << 20)) else 256
        if weight_tiling in (None, "resident"):
            while bm > 128 and not fits_resident(bm):
                bm //= 2
    else:
        bm = block_m
    bm = max(16, min(_round_up(bm, 16), _round_up(n, 16)))
    n_p = _round_up(n, bm)
    n_m = n_p // bm

    if weight_tiling is None:
        use_tiled = not fits_resident(bm)
    else:
        use_tiled = (weight_tiling == "htiled")

    # ---- pad / cast activations only when actually needed. ----
    if n_p != n or d_in_p != d_in:
        x2d = jnp.pad(x2d, ((0, n_p - n), (0, d_in_p - d_in)))
    if x2d.dtype != compute_dtype:
        x2d = x2d.astype(compute_dtype)

    # Advisory cost estimate (sigmoid ~= exp + reciprocal on the EUP).
    flops = 2 * n_p * d_in_p * (2 * h_p) + 2 * n_p * h_p * d_out_p
    transcendentals = 2 * n_p * h_p
    weight_bytes = ((2 * d_in_p * h_p + h_p * d_out_p) * itemsize
                    + (2 * h_p + d_out_p) * 4)
    act_bytes = n_p * d_in_p * itemsize + n_p * d_out_p * out_itemsize

    if not use_tiled:
        out2d = pl.pallas_call(
            _swiglu_resident_kernel,
            out_shape=jax.ShapeDtypeStruct((n_p, d_out_p), out_dtype),
            grid_spec=pltpu.PrefetchScalarGridSpec(
                num_scalar_prefetch=0,
                grid=(n_m,),
                in_specs=[
                    pl.BlockSpec((bm, d_in_p), lambda i: (i, 0)),        # x (streams)
                    # Grid-invariant weights/biases: VMEM-resident, single-buffered.
                    pl.BlockSpec((2, d_in_p, h_p), lambda i: (0, 0, 0),
                                 pipeline_mode=pl.Buffered(1)),
                    pl.BlockSpec((2, 1, h_p), lambda i: (0, 0, 0),
                                 pipeline_mode=pl.Buffered(1)),
                    pl.BlockSpec((h_p, d_out_p), lambda i: (0, 0),
                                 pipeline_mode=pl.Buffered(1)),
                    pl.BlockSpec((1, d_out_p), lambda i: (0, 0),
                                 pipeline_mode=pl.Buffered(1)),
                ],
                out_specs=pl.BlockSpec((bm, d_out_p), lambda i: (i, 0)),
            ),
            compiler_params=pltpu.CompilerParams(
                dimension_semantics=("parallel",),        # token axis -> megacore
                vmem_limit_bytes=vmem_limit),
            cost_estimate=pl.CostEstimate(
                flops=flops, transcendentals=transcendentals,
                bytes_accessed=act_bytes + weight_bytes),
        )(x2d, w12, b12, w3p, b3p)
    else:
        bh = _pick_block_h(h_p, desired=(block_h or 512))
        n_h = h_p // bh
        out2d = pl.pallas_call(
            _swiglu_htiled_kernel,
            out_shape=jax.ShapeDtypeStruct((n_p, d_out_p), out_dtype),
            grid_spec=pltpu.PrefetchScalarGridSpec(
                num_scalar_prefetch=0,
                grid=(n_m, n_h),
                in_specs=[
                    pl.BlockSpec((bm, d_in_p), lambda i, j: (i, 0)),       # x (held per i)
                    pl.BlockSpec((2, d_in_p, bh), lambda i, j: (0, 0, j)),  # W1/W2 H-tile
                    pl.BlockSpec((2, 1, bh), lambda i, j: (0, 0, j)),       # b1/b2 H-tile
                    pl.BlockSpec((bh, d_out_p), lambda i, j: (j, 0)),       # W3 H-tile
                    pl.BlockSpec((1, d_out_p), lambda i, j: (0, 0),
                                 pipeline_mode=pl.Buffered(1)),             # b3 (resident)
                ],
                out_specs=pl.BlockSpec((bm, d_out_p), lambda i, j: (i, 0)),
                scratch_shapes=[pltpu.VMEM((bm, d_out_p), jnp.float32)],
            ),
            compiler_params=pltpu.CompilerParams(
                dimension_semantics=("parallel", "arbitrary"),
                vmem_limit_bytes=vmem_limit),
            cost_estimate=pl.CostEstimate(
                flops=flops, transcendentals=transcendentals,
                bytes_accessed=act_bytes + weight_bytes * n_m),
        )(x2d, w12, b12, w3p, b3p)

    if n_p != n or d_out_p != out_features:
        out2d = out2d[:n, :out_features]
    return out2d.reshape(*orig_shape[:-1], out_features)


def swiglu_pallas(x, w1, b1, w2, b2, w3, b3, *, block_m=None, block_h=None,
                  compute_dtype=None, weight_tiling=None):
    """One-shot convenience wrapper (prepares params every call).

    For repeated use (a real model forward) call prepare_swiglu_params once per
    layer at load time and swiglu_apply per step, keeping weight fusion out of
    the hot path.
    """
    cd = _default_compute_dtype(x.dtype, compute_dtype)
    params = prepare_swiglu_params(w1, b1, w2, b2, w3, b3, compute_dtype=cd)
    return swiglu_apply(x, params, out_features=w3.shape[1],
                        block_m=block_m, block_h=block_h,
                        weight_tiling=weight_tiling)


def swiglu_ref(x, w1, b1, w2, b2, w3, b3):
    """Pure-JAX reference matching the PyTorch forward exactly (drop=0)."""
    x1 = x @ w1 + b1
    x2 = x @ w2 + b2
    hidden = jax.nn.silu(x1) * x2
    return hidden @ w3 + b3


if __name__ == "__main__":
    # Small shapes consistent with the module: tokens over (batch, seq).
    batch, seq = 2, 64                       # 128 tokens
    in_features, hidden_features, out_features = 32, 256, 32

    key = jax.random.PRNGKey(0)
    kx, k1, k2, k3, kb1, kb2, kb3 = jax.random.split(key, 7)

    x = jax.random.normal(kx, (batch, seq, in_features), dtype=jnp.float32)

    # Deterministic parameter init (Linear weights stored transposed: [in, out]).
    scale1 = 1.0 / jnp.sqrt(in_features)
    scale3 = 1.0 / jnp.sqrt(hidden_features)
    w1 = jax.random.uniform(k1, (in_features, hidden_features), jnp.float32, -scale1, scale1)
    w2 = jax.random.uniform(k2, (in_features, hidden_features), jnp.float32, -scale1, scale1)
    w3 = jax.random.uniform(k3, (hidden_features, out_features), jnp.float32, -scale3, scale3)
    b1 = jax.random.uniform(kb1, (hidden_features,), jnp.float32, -scale1, scale1)
    b2 = jax.random.uniform(kb2, (hidden_features,), jnp.float32, -scale1, scale1)
    b3 = jax.random.uniform(kb3, (out_features,), jnp.float32, -scale3, scale3)

    ref = swiglu_ref(x, w1, b1, w2, b2, w3, b3)

    # f32, resident weights, multi-step token grid (exercises Buffered(1) path).
    params_f32 = prepare_swiglu_params(w1, b1, w2, b2, w3, b3, compute_dtype=jnp.float32)
    out = swiglu_apply(x, params_f32, out_features=out_features,
                       block_m=64, weight_tiling="resident")
    out = jax.block_until_ready(out)
    assert out.shape == (batch, seq, out_features)
    assert jnp.allclose(out, ref, atol=1e-5, rtol=1e-5), "f32 resident mismatch vs reference"

    # f32, H-tiled weights (2 hidden tiles -> exercises accumulator init/finalize).
    out_t = swiglu_apply(x, params_f32, out_features=out_features,
                         block_m=64, block_h=128, weight_tiling="htiled")
    out_t = jax.block_until_ready(out_t)
    assert out_t.shape == (batch, seq, out_features)
    assert jnp.allclose(out_t, ref, atol=1e-5, rtol=1e-5), "f32 htiled mismatch vs reference"

    # bf16 MXU inputs (f32 accumulation) via the one-shot convenience wrapper.
    out_bf16 = swiglu_pallas(x, w1, b1, w2, b2, w3, b3, compute_dtype=jnp.bfloat16)
    out_bf16 = jax.block_until_ready(out_bf16)
    assert out_bf16.shape == (batch, seq, out_features)
    assert jnp.allclose(out_bf16.astype(jnp.float32), ref, atol=7.5e-2, rtol=7.5e-2), \
        "bf16 mismatch vs reference"

    print("KERNEL_OK")
</pallas_src>

<mosaic_0001>
module attributes {stable_mosaic.version = 11 : i64} {
  func.func @_swiglu_resident_kernel(%arg0: i32, %arg1: memref<64x128xf32, #tpu.memory_space<vmem>>, %arg2: memref<2x128x256xf32, #tpu.memory_space<vmem>>, %arg3: memref<2x1x256xf32, #tpu.memory_space<vmem>>, %arg4: memref<256x128xf32, #tpu.memory_space<vmem>>, %arg5: memref<1x128xf32, #tpu.memory_space<vmem>>, %arg6: memref<64x128xf32, #tpu.memory_space<vmem>>) attributes {dimension_semantics = [#tpu.dimension_semantics<parallel>], iteration_bounds = array<i64: 2>, scalar_prefetch = 0 : i64, scratch_operands = 0 : i64, tpu.core_type = #tpu.core_type<tc>, window_params = [{transform_indices = @transform_0, window_bounds = array<i64: 64, 128>}, {pipeline_mode = #tpu.pipeline_mode<synchronous>, transform_indices = @transform_1, window_bounds = array<i64: 2, 128, 256>}, {pipeline_mode = #tpu.pipeline_mode<synchronous>, transform_indices = @transform_2, window_bounds = array<i64: 2, 1, 256>}, {pipeline_mode = #tpu.pipeline_mode<synchronous>, transform_indices = @transform_3, window_bounds = array<i64: 256, 128>}, {pipeline_mode = #tpu.pipeline_mode<synchronous>, transform_indices = @transform_4, window_bounds = array<i64: 1, 128>}, {transform_indices = @transform_5, window_bounds = array<i64: 64, 128>}]} {
    %c0 = arith.constant 0 : index
    %c0_0 = arith.constant 0 : index
    %0 = vector.load %arg1[%c0, %c0_0] : memref<64x128xf32, #tpu.memory_space<vmem>>, vector<64x128xf32>
    %c0_1 = arith.constant 0 : index
    %c0_2 = arith.constant 0 : index
    %c0_3 = arith.constant 0 : index
    %1 = vector.load %arg2[%c0_1, %c0_2, %c0_3] : memref<2x128x256xf32, #tpu.memory_space<vmem>>, vector<1x128x256xf32>
    %2 = vector.shape_cast %1 : vector<1x128x256xf32> to vector<128x256xf32>
    %cst = arith.constant dense<0.000000e+00> : vector<64x256xf32>
    %3 = tpu.matmul %0, %2, %cst {dimension_numbers = #tpu.dot_dimension_numbers<[1], [0], [0], [1], [0, 0, 1, 1], [], []>} : vector<64x128xf32>, vector<128x256xf32>, vector<64x256xf32> -> vector<64x256xf32>
    %c0_4 = arith.constant 0 : index
    %c0_5 = arith.constant 0 : index
    %c0_6 = arith.constant 0 : index
    %4 = vector.load %arg3[%c0_4, %c0_5, %c0_6] : memref<2x1x256xf32, #tpu.memory_space<vmem>>, vector<1x1x256xf32>
    %5 = vector.shape_cast %4 : vector<1x1x256xf32> to vector<1x256xf32>
    %6 = vector.broadcast %5 : vector<1x256xf32> to vector<64x256xf32>
    %7 = arith.addf %3, %6 : vector<64x256xf32>
    %c1 = arith.constant 1 : index
    %c0_7 = arith.constant 0 : index
    %c0_8 = arith.constant 0 : index
    %8 = vector.load %arg2[%c1, %c0_7, %c0_8] : memref<2x128x256xf32, #tpu.memory_space<vmem>>, vector<1x128x256xf32>
    %9 = vector.shape_cast %8 : vector<1x128x256xf32> to vector<128x256xf32>
    %cst_9 = arith.constant dense<0.000000e+00> : vector<64x256xf32>
    %10 = tpu.matmul %0, %9, %cst_9 {dimension_numbers = #tpu.dot_dimension_numbers<[1], [0], [0], [1], [0, 0, 1, 1], [], []>} : vector<64x128xf32>, vector<128x256xf32>, vector<64x256xf32> -> vector<64x256xf32>
    %c1_10 = arith.constant 1 : index
    %c0_11 = arith.constant 0 : index
    %c0_12 = arith.constant 0 : index
    %11 = vector.load %arg3[%c1_10, %c0_11, %c0_12] : memref<2x1x256xf32, #tpu.memory_space<vmem>>, vector<1x1x256xf32>
    %12 = vector.shape_cast %11 : vector<1x1x256xf32> to vector<1x256xf32>
    %13 = vector.broadcast %12 : vector<1x256xf32> to vector<64x256xf32>
    %14 = arith.addf %10, %13 : vector<64x256xf32>
    %15 = arith.negf %7 : vector<64x256xf32>
    %16 = math.exp %15 : vector<64x256xf32>
    %cst_13 = arith.constant 1.000000e+00 : f32
    %17 = vector.broadcast %cst_13 : f32 to vector<64x256xf32>
    %18 = arith.addf %17, %16 : vector<64x256xf32>
    %19 = arith.divf %17, %18 : vector<64x256xf32>
    %20 = arith.mulf %7, %19 : vector<64x256xf32>
    %21 = arith.mulf %20, %14 : vector<64x256xf32>
    %c0_14 = arith.constant 0 : index
    %c0_15 = arith.constant 0 : index
    %22 = vector.load %arg4[%c0_14, %c0_15] : memref<256x128xf32, #tpu.memory_space<vmem>>, vector<256x128xf32>
    %cst_16 = arith.constant dense<0.000000e+00> : vector<64x128xf32>
    %23 = tpu.matmul %21, %22, %cst_16 {dimension_numbers = #tpu.dot_dimension_numbers<[1], [0], [0], [1], [0, 0, 1, 1], [], []>} : vector<64x256xf32>, vector<256x128xf32>, vector<64x128xf32> -> vector<64x128xf32>
    %c0_17 = arith.constant 0 : index
    %c0_18 = arith.constant 0 : index
    %24 = vector.load %arg5[%c0_17, %c0_18] : memref<1x128xf32, #tpu.memory_space<vmem>>, vector<1x128xf32>
    %25 = vector.broadcast %24 : vector<1x128xf32> to vector<64x128xf32>
    %26 = arith.addf %23, %25 : vector<64x128xf32>
    %c0_19 = arith.constant 0 : index
    %c0_20 = arith.constant 0 : index
    %27 = vector.load %arg6[%c0_19, %c0_20] : memref<64x128xf32, #tpu.memory_space<vmem>>, vector<64x128xf32>
    tpu.vector_store %arg6[%c0_19, %c0_20], %26 {strides = array<i32>} : memref<64x128xf32, #tpu.memory_space<vmem>>, vector<64x128xf32>,
    return
  }
  func.func @transform_0(%arg0: i32) -> (i32, i32) {
    %c0_i32 = arith.constant 0 : i32
    %c0_i32_0 = arith.constant 0 : i32
    return %arg0, %c0_i32 : i32, i32
  }
  func.func @transform_1(%arg0: i32) -> (i32, i32, i32) {
    %c0_i32 = arith.constant 0 : i32
    %c0_i32_0 = arith.constant 0 : i32
    %c0_i32_1 = arith.constant 0 : i32
    %c0_i32_2 = arith.constant 0 : i32
    return %c0_i32, %c0_i32_0, %c0_i32_1 : i32, i32, i32
  }
  func.func @transform_2(%arg0: i32) -> (i32, i32, i32) {
    %c0_i32 = arith.constant 0 : i32
    %c0_i32_0 = arith.constant 0 : i32
    %c0_i32_1 = arith.constant 0 : i32
    %c0_i32_2 = arith.constant 0 : i32
    return %c0_i32, %c0_i32_0, %c0_i32_1 : i32, i32, i32
  }
  func.func @transform_3(%arg0: i32) -> (i32, i32) {
    %c0_i32 = arith.constant 0 : i32
    %c0_i32_0 = arith.constant 0 : i32
    %c0_i32_1 = arith.constant 0 : i32
    return %c0_i32, %c0_i32_0 : i32, i32
  }
  func.func @transform_4(%arg0: i32) -> (i32, i32) {
    %c0_i32 = arith.constant 0 : i32
    %c0_i32_0 = arith.constant 0 : i32
    %c0_i32_1 = arith.constant 0 : i32
    return %c0_i32, %c0_i32_0 : i32, i32
  }
  func.func @transform_5(%arg0: i32) -> (i32, i32) {
    %c0_i32 = arith.constant 0 : i32
    %c0_i32_0 = arith.constant 0 : i32
    return %arg0, %c0_i32 : i32, i32
  }
}

</mosaic_0001>

<llo_original>
// kernel: swiglu_apply.1
$region0: #{swiglu_apply.1}
  #allocation0 [shape = 'u32[]', space=smem, size = 0x4, offset = 0x4, fixed_abs, tag = 'smem constant byte address 0x4 - core index']
  #allocation1 [shape = 'u32[144,128]{1,0:T(1,128)}', space=vmem, size = 0x12000, scoped, tag = 'internal scratch']
  %s0 = inlined_call_operand.vmem [shape: f32[128,128], index: 0, kind: input, shape index: {}]
  %s1 = inlined_call_operand.hbm [shape: f32[2,128,256], index: 1, kind: input, shape index: {}]
  %s2 = inlined_call_operand.vmem [shape: f32[2,1,256], index: 2, kind: input, shape index: {}]
  %s3 = inlined_call_operand.vmem [shape: f32[256,128], index: 3, kind: input, shape index: {}]
  %s4 = inlined_call_operand.vmem [shape: f32[1,128], index: 4, kind: input, shape index: {}]
  %s5 = inlined_call_operand.vmem [shape: f32[128,128], index: 5, kind: output, shape index: {}]
  %s6 = sld [smem:[#allocation0]]
  $region57: #{swiglu_apply.1} parent=0
    _
  %s8 = ssub.s32 1, %s6
  %s9 = scalar_select 0, %s8, %s6
  $region1: #{swiglu_apply.1} parent=0
    #allocation2 [shape = 'u8[262144]{0}', space=vmem, size = 0x40000, scoped, tag = 'input window, operand 1, single buffered']
    #allocation3 [shape = 's32[2]{0}', space=sflag, size = 0x8, scoped, tag = 'scoped memory for swiglu_apply.1']
    %10 = vsyncpa [#allocation3], 0
    loop: start=0, step=1, limit=4
    $region2: #{swiglu_apply.1} parent=1 // loop_pre_header
      _
    $region3: #{swiglu_apply.1} parent=1 // loop_header
      %s12 = sphi 0, %s16
      %p13 = scmp.ge.s32.totalorder %s12, 4
      %s22 = sphi 0, %s24
      %s25 = sphi 0, %s22
      %s26 = sphi 0, %s25
      %s42 = sphi 0, %s26
      %s46 = sphi 0, %s46
      %s48 = sphi 0, %s46
      %s49 = sphi 0, %s48
      %s63 = sphi 0, %s49
      %s67 = sphi 0, %s67
      %s69 = sphi 0, %s67
      %s70 = sphi 0, %s69
      %s84 = sphi 0, %s70
      %s88 = sphi 0, %s88
      %s90 = sphi 0, %s88
      %s91 = sphi 0, %s90
      %s105 = sphi 0, %s91
      %s109 = sphi 0, %s109
      %s111 = sphi 0, %s109
      %s112 = sphi 0, %s111
      %s126 = sphi 0, %s112
      %s132 = sphi 0, %s134
      %s135 = sphi 0, %s132
      %s136 = sphi 0, %s135
      %s152 = sphi 0, %s136
    $region4: #{swiglu_apply.1} parent=1 // loop_header_branch
      %15 = sbr.rel (%p13) target = $region8
    $region5: #{swiglu_apply.1} parent=1 // loop_body
      %s17 = ssub.s32 %s12, 1
      %s18 = ssub.s32 %s12, 2
      %s19 = sadd.s32 %s12, 1
      %s20 = ssub.s32 %s12, %s19
      %p21 = scmp.eq.s32.totalorder %s20, 0
      %s23 = sadd.s32 %s22, 1
      %s24 = scalar_select %p21, %s22, %s23
      %p27 = pneg %p21
      %p28 = scmp.eq.s32.totalorder %s12, 1
      %p29 = por %p27, %p28
      %p30 = scmp.ne.s32.totalorder %s22, %s25
      %p31 = scmp.eq.s32.totalorder %s12, 0
      %p32 = por %p30, %p31
      %p33 = scmp.ne.s32.totalorder %s22, %s25
      %p34 = scmp.eq.s32.totalorder %s17, 1
      %p35 = por %p33, %p34
      %p36 = scmp.ne.s32.totalorder %s25, %s26
      %p37 = scmp.eq.s32.totalorder %s17, 0
      %p38 = por %p36, %p37
      %p39 = scmp.ne.s32.totalorder %s25, %s26
      %p40 = scmp.eq.s32.totalorder %s18, 1
      %p41 = por %p39, %p40
      %p43 = scmp.ne.s32.totalorder %s26, %s42
      %p44 = scmp.eq.s32.totalorder %s18, 0
      %p45 = por %p43, %p44
      %s47 = sadd.s32 %s46, 1
      %p50 = scmp.eq.s32.totalorder %s12, 1
      %p51 = scmp.ne.s32.totalorder %s46, %s48
      %p52 = scmp.eq.s32.totalorder %s12, 0
      %p53 = por %p51, %p52
      %p54 = scmp.ne.s32.totalorder %s46, %s48
      %p55 = scmp.eq.s32.totalorder %s17, 1
      %p56 = por %p54, %p55
      %p57 = scmp.ne.s32.totalorder %s48, %s49
      %p58 = scmp.eq.s32.totalorder %s17, 0
      %p59 = por %p57, %p58
      %p60 = scmp.ne.s32.totalorder %s48, %s49
      %p61 = scmp.eq.s32.totalorder %s18, 1
      %p62 = por %p60, %p61
      %p64 = scmp.ne.s32.totalorder %s49, %s63
      %p65 = scmp.eq.s32.totalorder %s18, 0
      %p66 = por %p64, %p65
      %s68 = sadd.s32 %s67, 1
      %p71 = scmp.eq.s32.totalorder %s12, 1
      %p72 = scmp.ne.s32.totalorder %s67, %s69
      %p73 = scmp.eq.s32.totalorder %s12, 0
      %p74 = por %p72, %p73
      %p75 = scmp.ne.s32.totalorder %s67, %s69
      %p76 = scmp.eq.s32.totalorder %s17, 1
      %p77 = por %p75, %p76
      %p78 = scmp.ne.s32.totalorder %s69, %s70
      %p79 = scmp.eq.s32.totalorder %s17, 0
      %p80 = por %p78, %p79
      %p81 = scmp.ne.s32.totalorder %s69, %s70
      %p82 = scmp.eq.s32.totalorder %s18, 1
      %p83 = por %p81, %p82
      %p85 = scmp.ne.s32.totalorder %s70, %s84
      %p86 = scmp.eq.s32.totalorder %s18, 0
      %p87 = por %p85, %p86
      %s89 = sadd.s32 %s88, 1
      %p92 = scmp.eq.s32.totalorder %s12, 1
      %p93 = scmp.ne.s32.totalorder %s88, %s90
      %p94 = scmp.eq.s32.totalorder %s12, 0
      %p95 = por %p93, %p94
      %p96 = scmp.ne.s32.totalorder %s88, %s90
      %p97 = scmp.eq.s32.totalorder %s17, 1
      %p98 = por %p96, %p97
      %p99 = scmp.ne.s32.totalorder %s90, %s91
      %p100 = scmp.eq.s32.totalorder %s17, 0
      %p101 = por %p99, %p100
      %p102 = scmp.ne.s32.totalorder %s90, %s91
      %p103 = scmp.eq.s32.totalorder %s18, 1
      %p104 = por %p102, %p103
      %p106 = scmp.ne.s32.totalorder %s91, %s105
      %p107 = scmp.eq.s32.totalorder %s18, 0
      %p108 = por %p106, %p107
      %s110 = sadd.s32 %s109, 1
      %p113 = scmp.eq.s32.totalorder %s12, 1
      %p114 = scmp.ne.s32.totalorder %s109, %s111
      %p115 = scmp.eq.s32.totalorder %s12, 0
      %p116 = por %p114, %p115
      %p117 = scmp.ne.s32.totalorder %s109, %s111
      %p118 = scmp.eq.s32.totalorder %s17, 1
      %p119 = por %p117, %p118
      %p120 = scmp.ne.s32.totalorder %s111, %s112
      %p121 = scmp.eq.s32.totalorder %s17, 0
      %p122 = por %p120, %p121
      %p123 = scmp.ne.s32.totalorder %s111, %s112
      %p124 = scmp.eq.s32.totalorder %s18, 1
      %p125 = por %p123, %p124
      %p127 = scmp.ne.s32.totalorder %s112, %s126
      %p128 = scmp.eq.s32.totalorder %s18, 0
      %p129 = por %p127, %p128
      %s130 = ssub.s32 %s12, %s19
      %p131 = scmp.eq.s32.totalorder %s130, 0
      %s133 = sadd.s32 %s132, 1
      %s134 = scalar_select %p131, %s132, %s133
      %p137 = pneg %p131
      %p138 = scmp.eq.s32.totalorder %s12, 1
      %p139 = por %p137, %p138
      %p140 = scmp.ne.s32.totalorder %s132, %s135
      %p141 = scmp.eq.s32.totalorder %s12, 0
      %p142 = por %p140, %p141
      %p143 = scmp.ne.s32.totalorder %s132, %s135
      %p144 = scmp.eq.s32.totalorder %s17, 1
      %p145 = por %p143, %p144
      %p146 = scmp.ne.s32.totalorder %s135, %s136
      %p147 = scmp.eq.s32.totalorder %s17, 0
      %p148 = por %p146, %p147
      %p149 = scmp.ne.s32.totalorder %s135, %s136
      %p150 = scmp.eq.s32.totalorder %s18, 1
      %p151 = por %p149, %p150
      %p153 = scmp.ne.s32.totalorder %s136, %s152
      %p154 = scmp.eq.s32.totalorder %s18, 0
      %p155 = por %p153, %p154
      %p156 = scmp.le.s32.totalorder 1, %s12
      %p157 = scmp.lt.s32.totalorder %s12, 3
      %p158 = pnand %p156, %p157
      %p159 = pneg %p158
      // Predicated region
      $region9: #{swiglu_apply.1} parent=5 // pred_check
        _
      $region10: #{swiglu_apply.1} parent=5 // pred_check_branch
        %161 = sbr.rel (%p158) target = $region12
      $region11: #{swiglu_apply.1} parent=5 // pred_region
        %s162 = ssub.s32 %s12, 1
        // Predicated region
        $region13: #{swiglu_apply.1} parent=11 // pred_check
          %p163 = pneg %p59
        $region14: #{swiglu_apply.1} parent=11 // pred_check_branch
          %165 = sbr.rel (%p163) target = $region16
        $region15: #{swiglu_apply.1} parent=11 // pred_region
          %s167 = ssub.s32 8192, 8192
          %168 = vsyncadd [#allocation3], %s167
          %s169 = sshll.u32 [#allocation2], 4
          %s170 = int_to_ptr.vmem [resolvable:$true] %s169
          %175 = dma.hbm_to_vmem [thread:$0]  %s1, 8192, %s170, [#allocation3], 256, 256, 16
        $region16: #{swiglu_apply.1} parent=11 // pred_fallthru
          _
        // Predicated region
        $region17: #{swiglu_apply.1} parent=11 // pred_check
          %p176 = pneg %p80
        $region18: #{swiglu_apply.1} parent=11 // pred_check_branch
          %178 = sbr.rel (%p176) target = $region20
        $region19: #{swiglu_apply.1} parent=11 // pred_region
          _
        $region20: #{swiglu_apply.1} parent=11 // pred_fallthru
          _
        // Predicated region
        $region21: #{swiglu_apply.1} parent=11 // pred_check
          %p179 = pneg %p101
        $region22: #{swiglu_apply.1} parent=11 // pred_check_branch
          %181 = sbr.rel (%p179) target = $region24
        $region23: #{swiglu_apply.1} parent=11 // pred_region
          _
        $region24: #{swiglu_apply.1} parent=11 // pred_fallthru
          _
        // Predicated region
        $region25: #{swiglu_apply.1} parent=11 // pred_check
          %p182 = pneg %p122
        $region26: #{swiglu_apply.1} parent=11 // pred_check_branch
          %184 = sbr.rel (%p182) target = $region28
        $region27: #{swiglu_apply.1} parent=11 // pred_region
          _
        $region28: #{swiglu_apply.1} parent=11 // pred_fallthru
          _
      $region12: #{swiglu_apply.1} parent=5 // pred_fallthru
        _
      %p185 = scmp.lt.s32.totalorder %s12, 2
      // Predicated region
      $region29: #{swiglu_apply.1} parent=5 // pred_check
        %p186 = pneg %p185
      $region30: #{swiglu_apply.1} parent=5 // pred_check_branch
        %188 = sbr.rel (%p186) target = $region32
      $region31: #{swiglu_apply.1} parent=5 // pred_region
        // Predicated region
        $region33: #{swiglu_apply.1} parent=31 // pred_check
          %p189 = pneg %p32
        $region34: #{swiglu_apply.1} parent=31 // pred_check_branch
          %191 = sbr.rel (%p189) target = $region36
        $region35: #{swiglu_apply.1} parent=31 // pred_region
          %s192 = smul.u32 8, %s12
          %p193 = scmp.lt.s32.totalorder %s192, 15
          %s194 = scalar_select %p193, %s192, 15
          %s195 = smul.addr %s194, 8
          %s196 = scalar_lea.vmem %s0, %s195
          %s197 = smul.u32 8, %s12
        $region36: #{swiglu_apply.1} parent=31 // pred_fallthru
          _
      $region32: #{swiglu_apply.1} parent=5 // pred_fallthru
        _
      %p198 = scmp.le.s32.totalorder 1, %s12
      %p199 = scmp.lt.s32.totalorder %s12, 3
      %p200 = pnand %p198, %p199
      %p201 = pneg %p200
      // Predicated region
      $region37: #{swiglu_apply.1} parent=5 // pred_check
        _
      $region38: #{swiglu_apply.1} parent=5 // pred_check_branch
        %203 = sbr.rel (%p200) target = $region40
      $region39: #{swiglu_apply.1} parent=5 // pred_region
        %s204 = ssub.s32 %s12, 1
        // Predicated region
        $region41: #{swiglu_apply.1} parent=39 // pred_check
          %p205 = pneg %p59
        $region42: #{swiglu_apply.1} parent=39 // pred_check_branch
          %207 = sbr.rel (%p205) target = $region44
        $region43: #{swiglu_apply.1} parent=39 // pred_region
          %208 = dma.done [#allocation3], 8192
        $region44: #{swiglu_apply.1} parent=39 // pred_fallthru
          _
        %s209 = smul.u32 8, %s17
        %p210 = scmp.lt.s32.totalorder %s209, 15
        %s211 = scalar_select %p210, %s209, 15
        %s212 = smul.addr %s211, 8
        %s213 = scalar_lea.vmem %s0, %s212
        %p214 = pneg %p38
        %p215 = pneg %p35
        %p216 = pneg %p59
        %p217 = pneg %p56
        %p218 = pneg %p80
        %p219 = pneg %p77
        %p220 = pneg %p101
        %p221 = pneg %p98
        %p222 = pneg %p122
        %p223 = pneg %p119
        %p224 = pneg %p148
        %p225 = pneg %p145
        %s226 = smul.u32 8, %s17
        %p227 = scmp.lt.s32.totalorder %s226, 15
        %s228 = scalar_select %p227, %s226, 15
        %s229 = smul.addr %s228, 8
        %s230 = scalar_lea.vmem %s5, %s229
        %s231 = smul.u32 8, %s17
        %p232 = scmp.lt.s32.totalorder %s231, 15
        %s233 = scalar_select %p232, %s231, 15
        %s234 = smul.addr %s233, 8
        %s235 = scalar_lea.vmem %s0, %s234
        %s236 = smul.u32 8, %s17
        %s237 = smul.u32 8, %s17
        %p238 = scmp.lt.s32.totalorder %s237, 15
        %s239 = scalar_select %p238, %s237, 15
        %s240 = smul.addr %s239, 8
        %s241 = scalar_lea.vmem %s5, %s240
        %s242 = smul.u32 8, %s17
        %v243 = vld [vmem:[%s235] sm:$0xff]
        %v244 = vld [vmem:[%s235 + $0x8] sm:$0xff]
        %v245 = vld [vmem:[%s235 + $0x10] sm:$0xff]
        %v246 = vld [vmem:[%s235 + $0x18] sm:$0xff]
        %v247 = vld [vmem:[%s235 + $0x20] sm:$0xff]
        %v248 = vld [vmem:[%s235 + $0x28] sm:$0xff]
        %v249 = vld [vmem:[%s235 + $0x30] sm:$0xff]
        %v250 = vld [vmem:[%s235 + $0x38] sm:$0xff]
        %v251 = vld [vmem:[#allocation2] sm:$0xff]
        %v252 = vld [vmem:[#allocation2 + $0x8] sm:$0xff]
        %v253 = vld [vmem:[#allocation2 + $0x10] sm:$0xff]
        %v254 = vld [vmem:[#allocation2 + $0x18] sm:$0xff]
        %v255 = vld [vmem:[#allocation2 + $0x20] sm:$0xff]
        %v256 = vld [vmem:[#allocation2 + $0x28] sm:$0xff]
        %v257 = vld [vmem:[#allocation2 + $0x30] sm:$0xff]
        %v258 = vld [vmem:[#allocation2 + $0x38] sm:$0xff]
        %v259 = vld [vmem:[#allocation2 + $0x40] sm:$0xff]
        %v260 = vld [vmem:[#allocation2 + $0x48] sm:$0xff]
        %v261 = vld [vmem:[#allocation2 + $0x50] sm:$0xff]
        %v262 = vld [vmem:[#allocation2 + $0x58] sm:$0xff]
        %v263 = vld [vmem:[#allocation2 + $0x60] sm:$0xff]
        %v264 = vld [vmem:[#allocation2 + $0x68] sm:$0xff]
        %v265 = vld [vmem:[#allocation2 + $0x70] sm:$0xff]
        %v266 = vld [vmem:[#allocation2 + $0x78] sm:$0xff]
        %v267 = vld [vmem:[#allocation2 + $0x80] sm:$0xff]
        %v268 = vld [vmem:[#allocation2 + $0x88] sm:$0xff]
        %v269 = vld [vmem:[#allocation2 + $0x90] sm:$0xff]
        %v270 = vld [vmem:[#allocation2 + $0x98] sm:$0xff]
        %v271 = vld [vmem:[#allocation2 + $0xa0] sm:$0xff]
        %v272 = vld [vmem:[#allocation2 + $0xa8] sm:$0xff]
        %v273 = vld [vmem:[#allocation2 + $0xb0] sm:$0xff]
        %v274 = vld [vmem:[#allocation2 + $0xb8] sm:$0xff]
        %v275 = vld [vmem:[#allocation2 + $0xc0] sm:$0xff]
        %v276 = vld [vmem:[#allocation2 + $0xc8] sm:$0xff]
        %v277 = vld [vmem:[#allocation2 + $0xd0] sm:$0xff]
        %v278 = vld [vmem:[#allocation2 + $0xd8] sm:$0xff]
        %v279 = vld [vmem:[#allocation2 + $0xe0] sm:$0xff]
        %v280 = vld [vmem:[#allocation2 + $0xe8] sm:$0xff]
        %v281 = vld [vmem:[#allocation2 + $0xf0] sm:$0xff]
        %v282 = vld [vmem:[#allocation2 + $0xf8] sm:$0xff]
        %v283 = vld [vmem:[%s2] sm:$0x3]
        %v285 = vlaneseq
        %v286 = vshrl.u32 %v285, 7
        %v287 = vsub.s32 0, %v286
        %v288 = vrot.slane %v283, %v287
        %v289 = vlaneseq
        %v290 = vshrl.u32 %v289, 7
        %v291 = vsub.s32 1, %v290
        %v292 = vrot.slane %v283, %v291
        %295 = vmatprep.subr.mxu0 %v282
        %296 = vmatpush1.msra.mxu0 %v281
        %297 = vmatprep.subr.mxu0 %v280
        %298 = vmatpush1.msra.mxu0 %v279
        %299 = vmatprep.subr.mxu0 %v278
        %300 = vmatpush1.msra.mxu0 %v277
        %301 = vmatprep.subr.mxu0 %v276
        %302 = vmatpush1.msra.mxu0 %v275
        %303 = vmatprep.subr.mxu0 %v274
        %304 = vmatpush1.msra.mxu0 %v273
        %305 = vmatprep.subr.mxu0 %v272
        %306 = vmatpush1.msra.mxu0 %v271
        %307 = vmatprep.subr.mxu0 %v270
        %308 = vmatpush1.msra.mxu0 %v269
        %309 = vmatprep.subr.mxu0 %v268
        %310 = vmatpush1.msra.mxu0 %v267
        %311 = vmatprep.subr.mxu0 %v266
        %312 = vmatpush1.msra.mxu0 %v265
        %313 = vmatprep.subr.mxu0 %v264
        %314 = vmatpush1.msra.mxu0 %v263
        %315 = vmatprep.subr.mxu0 %v262
        %316 = vmatpush1.msra.mxu0 %v261
        %317 = vmatprep.subr.mxu0 %v260
        %318 = vmatpush1.msra.mxu0 %v259
        %319 = vmatprep.subr.mxu0 %v258
        %320 = vmatpush1.msra.mxu0 %v257
        %321 = vmatprep.subr.mxu0 %v256
        %322 = vmatpush1.msra.mxu0 %v255
        %323 = vmatprep.subr.mxu0 %v254
        %324 = vmatpush1.msra.mxu0 %v253
        %325 = vmatprep.subr.mxu0 %v252
        %326 = vmatpush1.msra.mxu0 %v251
        %327 = vmatprep.subr.mxu0 0.0
        %328 = vmatpush2.msra.mxu0 0.0
        %329 = vmatprep.subr.mxu0 0.0
        %330 = vmatpush2.msra.mxu0 0.0
        %331 = vmatprep.subr.mxu0 0.0
        %332 = vmatpush2.msra.mxu0 0.0
        %333 = vmatprep.subr.mxu0 0.0
        %334 = vmatpush2.msra.mxu0 0.0
        %335 = vmatprep.subr.mxu0 0.0
        %336 = vmatpush2.msra.mxu0 0.0
        %337 = vmatprep.subr.mxu0 0.0
        %338 = vmatpush2.msra.mxu0 0.0
        %339 = vmatprep.subr.mxu0 0.0
        %340 = vmatpush2.msra.mxu0 0.0
        %341 = vmatprep.subr.mxu0 0.0
        %342 = vmatpush2.msra.mxu0 0.0
        %343 = vmatprep.subr.mxu0 0.0
        %344 = vmatpush2.msra.mxu0 0.0
        %345 = vmatprep.subr.mxu0 0.0
        %346 = vmatpush2.msra.mxu0 0.0
        %347 = vmatprep.subr.mxu0 0.0
        %348 = vmatpush2.msra.mxu0 0.0
        %349 = vmatprep.subr.mxu0 0.0
        %350 = vmatpush2.msra.mxu0 0.0
        %351 = vmatprep.subr.mxu0 0.0
        %352 = vmatpush2.msra.mxu0 0.0
        %353 = vmatprep.subr.mxu0 0.0
        %354 = vmatpush2.msra.mxu0 0.0
        %355 = vmatprep.subr.mxu0 0.0
        %356 = vmatpush2.msra.mxu0 0.0
        %357 = vmatprep.subr.mxu0 0.0
        %358 = vmatpush2.msra.mxu0 0.0
        %359 = vmatprep.mubr.f32.mxu0 0.0
        %360 = vmatmul.mubr.f32.gmra.mxu0 %v243
        %v361 = vpop.f32.mrf.mxu0
        %v362 = vadd.f32 %v288, %v361
        %v363 = vpop.f32.mrf.mxu0
        %v364 = vadd.f32 %v292, %v363
        %365 = vmatprep.mubr.f32.mxu0 0.0
        %366 = vmatmul.mubr.f32.gmra.mxu0 %v244
        %v367 = vpop.f32.mrf.mxu0
        %v368 = vadd.f32 %v288, %v367
        %v369 = vpop.f32.mrf.mxu0
        %v370 = vadd.f32 %v292, %v369
        %371 = vmatprep.mubr.f32.mxu0 0.0
        %372 = vmatmul.mubr.f32.gmra.mxu0 %v245
        %v373 = vpop.f32.mrf.mxu0
        %v374 = vadd.f32 %v288, %v373
        %v375 = vpop.f32.mrf.mxu0
        %v376 = vadd.f32 %v292, %v375
        %377 = vmatprep.mubr.f32.mxu0 0.0
        %378 = vmatmul.mubr.f32.gmra.mxu0 %v246
        %v379 = vpop.f32.mrf.mxu0
        %v380 = vadd.f32 %v288, %v379
        %v381 = vpop.f32.mrf.mxu0
        %v382 = vadd.f32 %v292, %v381
        %383 = vmatprep.mubr.f32.mxu0 0.0
        %384 = vmatmul.mubr.f32.gmra.mxu0 %v247
        %v385 = vpop.f32.mrf.mxu0
        %v386 = vadd.f32 %v288, %v385
        %v387 = vpop.f32.mrf.mxu0
        %v388 = vadd.f32 %v292, %v387
        %389 = vmatprep.mubr.f32.mxu0 0.0
        %390 = vmatmul.mubr.f32.gmra.mxu0 %v248
        %v391 = vpop.f32.mrf.mxu0
        %v392 = vadd.f32 %v288, %v391
        %v393 = vpop.f32.mrf.mxu0
        %v394 = vadd.f32 %v292, %v393
        %395 = vmatprep.mubr.f32.mxu0 0.0
        %396 = vmatmul.mubr.f32.gmra.mxu0 %v249
        %v397 = vpop.f32.mrf.mxu0
        %v398 = vadd.f32 %v288, %v397
        %v399 = vpop.f32.mrf.mxu0
        %v400 = vadd.f32 %v292, %v399
        %401 = vmatprep.mubr.f32.mxu0 0.0
        %402 = vmatmul.mubr.f32.gmra.mxu0 %v250
        %v403 = vpop.f32.mrf.mxu0
        %v404 = vadd.f32 %v288, %v403
        %v405 = vpop.f32.mrf.mxu0
        %v406 = vadd.f32 %v292, %v405
        %407 = vdwg.mxu0
        %s408 = scalar_lea.vmem [#allocation2], 256
        %v409 = vld [vmem:[%s408] sm:$0xff]
        %v410 = vld [vmem:[%s408 + $0x8] sm:$0xff]
        %v411 = vld [vmem:[%s408 + $0x10] sm:$0xff]
        %v412 = vld [vmem:[%s408 + $0x18] sm:$0xff]
        %v413 = vld [vmem:[%s408 + $0x20] sm:$0xff]
        %v414 = vld [vmem:[%s408 + $0x28] sm:$0xff]
        %v415 = vld [vmem:[%s408 + $0x30] sm:$0xff]
        %v416 = vld [vmem:[%s408 + $0x38] sm:$0xff]
        %v417 = vld [vmem:[%s408 + $0x40] sm:$0xff]
        %v418 = vld [vmem:[%s408 + $0x48] sm:$0xff]
        %v419 = vld [vmem:[%s408 + $0x50] sm:$0xff]
        %v420 = vld [vmem:[%s408 + $0x58] sm:$0xff]
        %v421 = vld [vmem:[%s408 + $0x60] sm:$0xff]
        %v422 = vld [vmem:[%s408 + $0x68] sm:$0xff]
        %v423 = vld [vmem:[%s408 + $0x70] sm:$0xff]
        %v424 = vld [vmem:[%s408 + $0x78] sm:$0xff]
        %v425 = vld [vmem:[%s408 + $0x80] sm:$0xff]
        %v426 = vld [vmem:[%s408 + $0x88] sm:$0xff]
        %v427 = vld [vmem:[%s408 + $0x90] sm:$0xff]
        %v428 = vld [vmem:[%s408 + $0x98] sm:$0xff]
        %v429 = vld [vmem:[%s408 + $0xa0] sm:$0xff]
        %v430 = vld [vmem:[%s408 + $0xa8] sm:$0xff]
        %v431 = vld [vmem:[%s408 + $0xb0] sm:$0xff]
        %v432 = vld [vmem:[%s408 + $0xb8] sm:$0xff]
        %v433 = vld [vmem:[%s408 + $0xc0] sm:$0xff]
        %v434 = vld [vmem:[%s408 + $0xc8] sm:$0xff]
        %v435 = vld [vmem:[%s408 + $0xd0] sm:$0xff]
        %v436 = vld [vmem:[%s408 + $0xd8] sm:$0xff]
        %v437 = vld [vmem:[%s408 + $0xe0] sm:$0xff]
        %v438 = vld [vmem:[%s408 + $0xe8] sm:$0xff]
        %v439 = vld [vmem:[%s408 + $0xf0] sm:$0xff]
        %v440 = vld [vmem:[%s408 + $0xf8] sm:$0xff]
        %s441 = scalar_lea.vmem %s2, 2
        %v442 = vld [vmem:[%s441] sm:$0x3]
        %v444 = vlaneseq
        %v445 = vshrl.u32 %v444, 7
        %v446 = vsub.s32 0, %v445
        %v447 = vrot.slane %v442, %v446
        %v448 = vlaneseq
        %v449 = vshrl.u32 %v448, 7
        %v450 = vsub.s32 1, %v449
        %v451 = vrot.slane %v442, %v450
        %454 = vmatprep.subr.mxu0 %v440
        %455 = vmatpush1.msra.mxu0 %v439
        %456 = vmatprep.subr.mxu0 %v438
        %457 = vmatpush1.msra.mxu0 %v437
        %458 = vmatprep.subr.mxu0 %v436
        %459 = vmatpush1.msra.mxu0 %v435
        %460 = vmatprep.subr.mxu0 %v434
        %461 = vmatpush1.msra.mxu0 %v433
        %462 = vmatprep.subr.mxu0 %v432
        %463 = vmatpush1.msra.mxu0 %v431
        %464 = vmatprep.subr.mxu0 %v430
        %465 = vmatpush1.msra.mxu0 %v429
        %466 = vmatprep.subr.mxu0 %v428
        %467 = vmatpush1.msra.mxu0 %v427
        %468 = vmatprep.subr.mxu0 %v426
        %469 = vmatpush1.msra.mxu0 %v425
        %470 = vmatprep.subr.mxu0 %v424
        %471 = vmatpush1.msra.mxu0 %v423
        %472 = vmatprep.subr.mxu0 %v422
        %473 = vmatpush1.msra.mxu0 %v421
        %474 = vmatprep.subr.mxu0 %v420
        %475 = vmatpush1.msra.mxu0 %v419
        %476 = vmatprep.subr.mxu0 %v418
        %477 = vmatpush1.msra.mxu0 %v417
        %478 = vmatprep.subr.mxu0 %v416
        %479 = vmatpush1.msra.mxu0 %v415
        %480 = vmatprep.subr.mxu0 %v414
        %481 = vmatpush1.msra.mxu0 %v413
        %482 = vmatprep.subr.mxu0 %v412
        %483 = vmatpush1.msra.mxu0 %v411
        %484 = vmatprep.subr.mxu0 %v410
        %485 = vmatpush1.msra.mxu0 %v409
        %486 = vmatprep.subr.mxu0 0.0
        %487 = vmatpush2.msra.mxu0 0.0
        %488 = vmatprep.subr.mxu0 0.0
        %489 = vmatpush2.msra.mxu0 0.0
        %490 = vmatprep.subr.mxu0 0.0
        %491 = vmatpush2.msra.mxu0 0.0
        %492 = vmatprep.subr.mxu0 0.0
        %493 = vmatpush2.msra.mxu0 0.0
        %494 = vmatprep.subr.mxu0 0.0
        %495 = vmatpush2.msra.mxu0 0.0
        %496 = vmatprep.subr.mxu0 0.0
        %497 = vmatpush2.msra.mxu0 0.0
        %498 = vmatprep.subr.mxu0 0.0
        %499 = vmatpush2.msra.mxu0 0.0
        %500 = vmatprep.subr.mxu0 0.0
        %501 = vmatpush2.msra.mxu0 0.0
        %502 = vmatprep.subr.mxu0 0.0
        %503 = vmatpush2.msra.mxu0 0.0
        %504 = vmatprep.subr.mxu0 0.0
        %505 = vmatpush2.msra.mxu0 0.0
        %506 = vmatprep.subr.mxu0 0.0
        %507 = vmatpush2.msra.mxu0 0.0
        %508 = vmatprep.subr.mxu0 0.0
        %509 = vmatpush2.msra.mxu0 0.0
        %510 = vmatprep.subr.mxu0 0.0
        %511 = vmatpush2.msra.mxu0 0.0
        %512 = vmatprep.subr.mxu0 0.0
        %513 = vmatpush2.msra.mxu0 0.0
        %514 = vmatprep.subr.mxu0 0.0
        %515 = vmatpush2.msra.mxu0 0.0
        %516 = vmatprep.subr.mxu0 0.0
        %517 = vmatpush2.msra.mxu0 0.0
        %518 = vmatprep.mubr.f32.mxu0 0.0
        %519 = vmatmul.mubr.f32.gmra.mxu0 %v243
        %v520 = vpop.f32.mrf.mxu0
        %v521 = vadd.f32 %v447, %v520
        %v522 = vpop.f32.mrf.mxu0
        %v523 = vadd.f32 %v451, %v522
        %524 = vmatprep.mubr.f32.mxu0 0.0
        %525 = vmatmul.mubr.f32.gmra.mxu0 %v244
        %v526 = vpop.f32.mrf.mxu0
        %v527 = vadd.f32 %v447, %v526
        %v528 = vpop.f32.mrf.mxu0
        %v529 = vadd.f32 %v451, %v528
        %530 = vmatprep.mubr.f32.mxu0 0.0
        %531 = vmatmul.mubr.f32.gmra.mxu0 %v245
        %v532 = vpop.f32.mrf.mxu0
        %v533 = vadd.f32 %v447, %v532
        %v534 = vpop.f32.mrf.mxu0
        %v535 = vadd.f32 %v451, %v534
        %536 = vmatprep.mubr.f32.mxu0 0.0
        %537 = vmatmul.mubr.f32.gmra.mxu0 %v246
        %v538 = vpop.f32.mrf.mxu0
        %v539 = vadd.f32 %v447, %v538
        %v540 = vpop.f32.mrf.mxu0
        %v541 = vadd.f32 %v451, %v540
        %542 = vmatprep.mubr.f32.mxu0 0.0
        %543 = vmatmul.mubr.f32.gmra.mxu0 %v247
        %v544 = vpop.f32.mrf.mxu0
        %v545 = vadd.f32 %v447, %v544
        %v546 = vpop.f32.mrf.mxu0
        %v547 = vadd.f32 %v451, %v546
        %548 = vmatprep.mubr.f32.mxu0 0.0
        %549 = vmatmul.mubr.f32.gmra.mxu0 %v248
        %v550 = vpop.f32.mrf.mxu0
        %v551 = vadd.f32 %v447, %v550
        %v552 = vpop.f32.mrf.mxu0
        %v553 = vadd.f32 %v451, %v552
        %554 = vmatprep.mubr.f32.mxu0 0.0
        %555 = vmatmul.mubr.f32.gmra.mxu0 %v249
        %v556 = vpop.f32.mrf.mxu0
        %v557 = vadd.f32 %v447, %v556
        %v558 = vpop.f32.mrf.mxu0
        %v559 = vadd.f32 %v451, %v558
        %560 = vmatprep.mubr.f32.mxu0 0.0
        %561 = vmatmul.mubr.f32.gmra.mxu0 %v250
        %v562 = vpop.f32.mrf.mxu0
        %v563 = vadd.f32 %v447, %v562
        %v564 = vpop.f32.mrf.mxu0
        %v565 = vadd.f32 %v451, %v564
        %566 = vdwg.mxu0
        %v567 = vxor.u32 %v362, 2147483648
        %v568 = vxor.u32 %v364, 2147483648
        %v569 = vxor.u32 %v368, 2147483648
        %v570 = vxor.u32 %v370, 2147483648
        %v571 = vxor.u32 %v374, 2147483648
        %v572 = vxor.u32 %v376, 2147483648
        %v573 = vxor.u32 %v380, 2147483648
        %v574 = vxor.u32 %v382, 2147483648
        %v575 = vxor.u32 %v386, 2147483648
        %v576 = vxor.u32 %v388, 2147483648
        %v577 = vxor.u32 %v392, 2147483648
        %v578 = vxor.u32 %v394, 2147483648
        %v579 = vxor.u32 %v398, 2147483648
        %v580 = vxor.u32 %v400, 2147483648
        %v581 = vxor.u32 %v404, 2147483648
        %v582 = vxor.u32 %v406, 2147483648
        %v583 = vmul.f32 %v567, 1.442695
        %v584 = vpow.pop %v583
        %v585 = vmul.f32 %v568, 1.442695
        %v586 = vpow.pop %v585
        %v587 = vmul.f32 %v569, 1.442695
        %v588 = vpow.pop %v587
        %v589 = vmul.f32 %v570, 1.442695
        %v590 = vpow.pop %v589
        %v591 = vmul.f32 %v571, 1.442695
        %v592 = vpow.pop %v591
        %v593 = vmul.f32 %v572, 1.442695
        %v594 = vpow.pop %v593
        %v595 = vmul.f32 %v573, 1.442695
        %v596 = vpow.pop %v595
        %v597 = vmul.f32 %v574, 1.442695
        %v598 = vpow.pop %v597
        %v599 = vmul.f32 %v575, 1.442695
        %v600 = vpow.pop %v599
        %v601 = vmul.f32 %v576, 1.442695
        %v602 = vpow.pop %v601
        %v603 = vmul.f32 %v577, 1.442695
        %v604 = vpow.pop %v603
        %v605 = vmul.f32 %v578, 1.442695
        %v606 = vpow.pop %v605
        %v607 = vmul.f32 %v579, 1.442695
        %v608 = vpow.pop %v607
        %v609 = vmul.f32 %v580, 1.442695
        %v610 = vpow.pop %v609
        %v611 = vmul.f32 %v581, 1.442695
        %v612 = vpow.pop %v611
        %v613 = vmul.f32 %v582, 1.442695
        %v614 = vpow.pop %v613
        %v615 = vadd.f32 %v584, 1.0
        %v616 = vadd.f32 %v586, 1.0
        %v617 = vadd.f32 %v588, 1.0
        %v618 = vadd.f32 %v590, 1.0
        %v619 = vadd.f32 %v592, 1.0
        %v620 = vadd.f32 %v594, 1.0
        %v621 = vadd.f32 %v596, 1.0
        %v622 = vadd.f32 %v598, 1.0
        %v623 = vadd.f32 %v600, 1.0
        %v624 = vadd.f32 %v602, 1.0
        %v625 = vadd.f32 %v604, 1.0
        %v626 = vadd.f32 %v606, 1.0
        %v627 = vadd.f32 %v608, 1.0
        %v628 = vadd.f32 %v610, 1.0
        %v629 = vadd.f32 %v612, 1.0
        %v630 = vadd.f32 %v614, 1.0
        %v631 = vrcp.pop %v615
        %v632 = vmul.f32 1.0, %v631
        %v633 = vrcp.pop %v616
        %v634 = vmul.f32 1.0, %v633
        %v635 = vrcp.pop %v617
        %v636 = vmul.f32 1.0, %v635
        %v637 = vrcp.pop %v618
        %v638 = vmul.f32 1.0, %v637
        %v639 = vrcp.pop %v619
        %v640 = vmul.f32 1.0, %v639
        %v641 = vrcp.pop %v620
        %v642 = vmul.f32 1.0, %v641
        %v643 = vrcp.pop %v621
        %v644 = vmul.f32 1.0, %v643
        %v645 = vrcp.pop %v622
        %v646 = vmul.f32 1.0, %v645
        %v647 = vrcp.pop %v623
        %v648 = vmul.f32 1.0, %v647
        %v649 = vrcp.pop %v624
        %v650 = vmul.f32 1.0, %v649
        %v651 = vrcp.pop %v625
        %v652 = vmul.f32 1.0, %v651
        %v653 = vrcp.pop %v626
        %v654 = vmul.f32 1.0, %v653
        %v655 = vrcp.pop %v627
        %v656 = vmul.f32 1.0, %v655
        %v657 = vrcp.pop %v628
        %v658 = vmul.f32 1.0, %v657
        %v659 = vrcp.pop %v629
        %v660 = vmul.f32 1.0, %v659
        %v661 = vrcp.pop %v630
        %v662 = vmul.f32 1.0, %v661
        %v663 = vmul.f32 %v362, %v632
        %v664 = vmul.f32 %v364, %v634
        %v665 = vmul.f32 %v368, %v636
        %v666 = vmul.f32 %v370, %v638
        %v667 = vmul.f32 %v374, %v640
        %v668 = vmul.f32 %v376, %v642
        %v669 = vmul.f32 %v380, %v644
        %v670 = vmul.f32 %v382, %v646
        %v671 = vmul.f32 %v386, %v648
        %v672 = vmul.f32 %v388, %v650
        %v673 = vmul.f32 %v392, %v652
        %v674 = vmul.f32 %v394, %v654
        %v675 = vmul.f32 %v398, %v656
        %v676 = vmul.f32 %v400, %v658
        %v677 = vmul.f32 %v404, %v660
        %v678 = vmul.f32 %v406, %v662
        %v679 = vmul.f32 %v663, %v521
        %v680 = vmul.f32 %v664, %v523
        %v681 = vmul.f32 %v665, %v527
        %v682 = vmul.f32 %v666, %v529
        %v683 = vmul.f32 %v667, %v533
        %v684 = vmul.f32 %v668, %v535
        %v685 = vmul.f32 %v669, %v539
        %v686 = vmul.f32 %v670, %v541
        %v687 = vmul.f32 %v671, %v545
        %v688 = vmul.f32 %v672, %v547
        %v689 = vmul.f32 %v673, %v551
        %v690 = vmul.f32 %v674, %v553
        %v691 = vmul.f32 %v675, %v557
        %v692 = vmul.f32 %v676, %v559
        %v693 = vmul.f32 %v677, %v563
        %v694 = vmul.f32 %v678, %v565
        %v695 = vld [vmem:[%s3] sm:$0xff]
        %v696 = vld [vmem:[%s3 + $0x8] sm:$0xff]
        %v697 = vld [vmem:[%s3 + $0x10] sm:$0xff]
        %v698 = vld [vmem:[%s3 + $0x18] sm:$0xff]
        %v699 = vld [vmem:[%s3 + $0x20] sm:$0xff]
        %v700 = vld [vmem:[%s3 + $0x28] sm:$0xff]
        %v701 = vld [vmem:[%s3 + $0x30] sm:$0xff]
        %v702 = vld [vmem:[%s3 + $0x38] sm:$0xff]
        %v703 = vld [vmem:[%s3 + $0x40] sm:$0xff]
        %v704 = vld [vmem:[%s3 + $0x48] sm:$0xff]
        %v705 = vld [vmem:[%s3 + $0x50] sm:$0xff]
        %v706 = vld [vmem:[%s3 + $0x58] sm:$0xff]
        %v707 = vld [vmem:[%s3 + $0x60] sm:$0xff]
        %v708 = vld [vmem:[%s3 + $0x68] sm:$0xff]
        %v709 = vld [vmem:[%s3 + $0x70] sm:$0xff]
        %v710 = vld [vmem:[%s3 + $0x78] sm:$0xff]
        %v711 = vld [vmem:[%s3 + $0x80] sm:$0xff]
        %v712 = vld [vmem:[%s3 + $0x88] sm:$0xff]
        %v713 = vld [vmem:[%s3 + $0x90] sm:$0xff]
        %v714 = vld [vmem:[%s3 + $0x98] sm:$0xff]
        %v715 = vld [vmem:[%s3 + $0xa0] sm:$0xff]
        %v716 = vld [vmem:[%s3 + $0xa8] sm:$0xff]
        %v717 = vld [vmem:[%s3 + $0xb0] sm:$0xff]
        %v718 = vld [vmem:[%s3 + $0xb8] sm:$0xff]
        %v719 = vld [vmem:[%s3 + $0xc0] sm:$0xff]
        %v720 = vld [vmem:[%s3 + $0xc8] sm:$0xff]
        %v721 = vld [vmem:[%s3 + $0xd0] sm:$0xff]
        %v722 = vld [vmem:[%s3 + $0xd8] sm:$0xff]
        %v723 = vld [vmem:[%s3 + $0xe0] sm:$0xff]
        %v724 = vld [vmem:[%s3 + $0xe8] sm:$0xff]
        %v725 = vld [vmem:[%s3 + $0xf0] sm:$0xff]
        %v726 = vld [vmem:[%s3 + $0xf8] sm:$0xff]
        %v727 = vld [vmem:[%s4] sm:$0x1]
        %v729 = vlaneseq
        %v730 = vshrl.u32 %v729, 7
        %v731 = vsub.s32 0, %v730
        %v732 = vrot.slane %v727, %v731
        %734 = vmatprep.subr.mxu0 0.0
        %735 = vmatpush1.msra.mxu0 %v710
        %736 = vmatprep.subr.mxu0 0.0
        %737 = vmatpush1.msra.mxu0 %v709
        %738 = vmatprep.subr.mxu0 0.0
        %739 = vmatpush1.msra.mxu0 %v708
        %740 = vmatprep.subr.mxu0 0.0
        %741 = vmatpush1.msra.mxu0 %v707
        %742 = vmatprep.subr.mxu0 0.0
        %743 = vmatpush1.msra.mxu0 %v706
        %744 = vmatprep.subr.mxu0 0.0
        %745 = vmatpush1.msra.mxu0 %v705
        %746 = vmatprep.subr.mxu0 0.0
        %747 = vmatpush1.msra.mxu0 %v704
        %748 = vmatprep.subr.mxu0 0.0
        %749 = vmatpush1.msra.mxu0 %v703
        %750 = vmatprep.subr.mxu0 0.0
        %751 = vmatpush1.msra.mxu0 %v702
        %752 = vmatprep.subr.mxu0 0.0
        %753 = vmatpush1.msra.mxu0 %v701
        %754 = vmatprep.subr.mxu0 0.0
        %755 = vmatpush1.msra.mxu0 %v700
        %756 = vmatprep.subr.mxu0 0.0
        %757 = vmatpush1.msra.mxu0 %v699
        %758 = vmatprep.subr.mxu0 0.0
        %759 = vmatpush1.msra.mxu0 %v698
        %760 = vmatprep.subr.mxu0 0.0
        %761 = vmatpush1.msra.mxu0 %v697
        %762 = vmatprep.subr.mxu0 0.0
        %763 = vmatpush1.msra.mxu0 %v696
        %764 = vmatprep.subr.mxu0 0.0
        %765 = vmatpush1.msra.mxu0 %v695
        %766 = vmatprep.subr.mxu0 0.0
        %767 = vmatpush2.msra.mxu0 %v726
        %768 = vmatprep.subr.mxu0 0.0
        %769 = vmatpush2.msra.mxu0 %v725
        %770 = vmatprep.subr.mxu0 0.0
        %771 = vmatpush2.msra.mxu0 %v724
        %772 = vmatprep.subr.mxu0 0.0
        %773 = vmatpush2.msra.mxu0 %v723
        %774 = vmatprep.subr.mxu0 0.0
        %775 = vmatpush2.msra.mxu0 %v722
        %776 = vmatprep.subr.mxu0 0.0
        %777 = vmatpush2.msra.mxu0 %v721
        %778 = vmatprep.subr.mxu0 0.0
        %779 = vmatpush2.msra.mxu0 %v720
        %780 = vmatprep.subr.mxu0 0.0
        %781 = vmatpush2.msra.mxu0 %v719
        %782 = vmatprep.subr.mxu0 0.0
        %783 = vmatpush2.msra.mxu0 %v718
        %784 = vmatprep.subr.mxu0 0.0
        %785 = vmatpush2.msra.mxu0 %v717
        %786 = vmatprep.subr.mxu0 0.0
        %787 = vmatpush2.msra.mxu0 %v716
        %788 = vmatprep.subr.mxu0 0.0
        %789 = vmatpush2.msra.mxu0 %v715
        %790 = vmatprep.subr.mxu0 0.0
        %791 = vmatpush2.msra.mxu0 %v714
        %792 = vmatprep.subr.mxu0 0.0
        %793 = vmatpush2.msra.mxu0 %v713
        %794 = vmatprep.subr.mxu0 0.0
        %795 = vmatpush2.msra.mxu0 %v712
        %796 = vmatprep.subr.mxu0 0.0
        %797 = vmatpush2.msra.mxu0 %v711
        %798 = vmatprep.mubr.f32.mxu0 %v680
        %799 = vmatmul.mubr.f32.gmra.mxu0 %v679
        %v800 = vpop.f32.mrf.mxu0
        %v801 = vadd.f32 %v732, %v800
        %v802 = vpop.f32.mrf.mxu0
        %803 = vmatprep.mubr.f32.mxu0 %v682
        %804 = vmatmul.mubr.f32.gmra.mxu0 %v681
        %v805 = vpop.f32.mrf.mxu0
        %v806 = vadd.f32 %v732, %v805
        %v807 = vpop.f32.mrf.mxu0
        %808 = vmatprep.mubr.f32.mxu0 %v684
        %809 = vmatmul.mubr.f32.gmra.mxu0 %v683
        %v810 = vpop.f32.mrf.mxu0
        %v811 = vadd.f32 %v732, %v810
        %v812 = vpop.f32.mrf.mxu0
        %813 = vmatprep.mubr.f32.mxu0 %v686
        %814 = vmatmul.mubr.f32.gmra.mxu0 %v685
        %v815 = vpop.f32.mrf.mxu0
        %v816 = vadd.f32 %v732, %v815
        %v817 = vpop.f32.mrf.mxu0
        %818 = vmatprep.mubr.f32.mxu0 %v688
        %819 = vmatmul.mubr.f32.gmra.mxu0 %v687
        %v820 = vpop.f32.mrf.mxu0
        %v821 = vadd.f32 %v732, %v820
        %v822 = vpop.f32.mrf.mxu0
        %823 = vmatprep.mubr.f32.mxu0 %v690
        %824 = vmatmul.mubr.f32.gmra.mxu0 %v689
        %v825 = vpop.f32.mrf.mxu0
        %v826 = vadd.f32 %v732, %v825
        %v827 = vpop.f32.mrf.mxu0
        %828 = vmatprep.mubr.f32.mxu0 %v692
        %829 = vmatmul.mubr.f32.gmra.mxu0 %v691
        %v830 = vpop.f32.mrf.mxu0
        %v831 = vadd.f32 %v732, %v830
        %v832 = vpop.f32.mrf.mxu0
        %833 = vmatprep.mubr.f32.mxu0 %v694
        %834 = vmatmul.mubr.f32.gmra.mxu0 %v693
        %v835 = vpop.f32.mrf.mxu0
        %v836 = vadd.f32 %v732, %v835
        %v837 = vpop.f32.mrf.mxu0
        %838 = vdwg.mxu0
        %839 = vst [vmem:[%s241] sm:$0xff] %v801
        %840 = vst [vmem:[%s241 + $0x8] sm:$0xff] %v806
        %841 = vst [vmem:[%s241 + $0x10] sm:$0xff] %v811
        %842 = vst [vmem:[%s241 + $0x18] sm:$0xff] %v816
        %843 = vst [vmem:[%s241 + $0x20] sm:$0xff] %v821
        %844 = vst [vmem:[%s241 + $0x28] sm:$0xff] %v826
        %845 = vst [vmem:[%s241 + $0x30] sm:$0xff] %v831
        %846 = vst [vmem:[%s241 + $0x38] sm:$0xff] %v836
        %s847 = smul.u32 8, %s17
        %p848 = scmp.lt.s32.totalorder %s847, 15
        %s849 = scalar_select %p848, %s847, 15
        %s850 = smul.addr %s849, 8
        %s851 = scalar_lea.vmem %s5, %s850
        // Predicated region
        $region45: #{swiglu_apply.1} parent=39 // pred_check
          %p852 = pneg %p145
        $region46: #{swiglu_apply.1} parent=39 // pred_check_branch
          %854 = sbr.rel (%p852) target = $region48
        $region47: #{swiglu_apply.1} parent=39 // pred_region
          %s855 = smul.u32 8, %s17
        $region48: #{swiglu_apply.1} parent=39 // pred_fallthru
          _
      $region40: #{swiglu_apply.1} parent=5 // pred_fallthru
        _
      %p856 = scmp.le.s32.totalorder 2, %s12
      // Predicated region
      $region49: #{swiglu_apply.1} parent=5 // pred_check
        %p857 = pneg %p856
      $region50: #{swiglu_apply.1} parent=5 // pred_check_branch
        %859 = sbr.rel (%p857) target = $region52
      $region51: #{swiglu_apply.1} parent=5 // pred_region
        %s860 = ssub.s32 %s12, 2
        // Predicated region
        $region53: #{swiglu_apply.1} parent=51 // pred_check
          %p861 = pneg %p151
        $region54: #{swiglu_apply.1} parent=51 // pred_check_branch
          %863 = sbr.rel (%p861) target = $region56
        $region55: #{swiglu_apply.1} parent=51 // pred_region
          %s864 = smul.u32 8, %s18
          %p865 = scmp.lt.s32.totalorder %s864, 15
          %s866 = scalar_select %p865, %s864, 15
          %s867 = smul.addr %s866, 8
          %s868 = scalar_lea.vmem %s5, %s867
        $region56: #{swiglu_apply.1} parent=51 // pred_fallthru
          _
      $region52: #{swiglu_apply.1} parent=5 // pred_fallthru
        _
    $region6: #{swiglu_apply.1} parent=1 // loop_footer
      %s16 = sadd.s32 1, %s12
    $region7: #{swiglu_apply.1} parent=1 // loop_footer_branch
      %11 = sbr.rel target = $region3
    $region8: #{swiglu_apply.1} parent=1 // loop_exit
      _
    %869 = vsyncpa [#allocation3], 1
    %s870 = scalar_lea.sflag [#allocation3], 1
    %871 = vsyncpa %s870, 1

</llo_original>
